<compile_context>
chip_gen: v5e
topology: v5e:2x2
jax: 0.10.0
libtpu: 0.0.40
codegen_flags: <defaults>
</compile_context>

<pallas_src>
import math

import numpy as np

import jax
import jax.numpy as jnp
from jax.experimental import pallas as pl
from jax.experimental.pallas import tpu as pltpu

HIDDEN = (1024, 128, 64, 16, 1)   # hidden sizes fixed by the module

_SUBLANE = 8
_LANE = 128
_OUT_LANES = 32                   # lane-group width of the packed collapsed path
_PACK_MAX_FEATURES = 512          # packed path only when in_features <= this
_MIN_GRID_STEPS = 8               # large batches -> >=8 steps (v7x megacore)
_MIN_STEP_X_BYTES = 2 << 20       # but keep >=~2 MiB of x per step (overhead amort.)
_LAYERS_MAX_TILE_B = 512          # layered path: its own (smaller) tile bound


# ---------------------------------------------------------------------------
# helpers
# ---------------------------------------------------------------------------
def _round_up(x, m):
    return -(-x // m) * m


def _cdiv(a, b):
    return -(-a // b)


def _padded_tile_bytes(shape, dtype, buffers):
    """VMEM footprint of a tile after (8, 128) sublane/lane padding."""
    shape = tuple(int(s) for s in shape)
    if len(shape) == 1:
        shape = (1,) + shape
    *lead, r, c = shape
    n = math.prod(lead) * _round_up(r, _SUBLANE) * _round_up(c, _LANE)
    return n * jnp.dtype(dtype).itemsize * buffers


def _vmem_budget():
    """Generation-aware scoped-VMEM budget (v7x has only 64 MiB physical)."""
    cap = 64 << 20                       # conservative fallback == v7x physical VMEM
    try:
        cap = int(pltpu.get_tpu_info().vmem_capacity_bytes)
    except Exception:
        pass
    return int(min(cap - (12 << 20), 100 << 20))


def _vmem_limit(est_bytes, budget):
    return int(max(min(est_bytes + (4 << 20), budget), 16 << 20))


def _fold_affine(params):
    """Fold a chain of affine layers [(W [in,out], b [1,out]), ...] into one.

    Folded in float64 on the host (params are normally concrete) to avoid the
    reassociation error of a float32 fold; falls back to an on-device f32 fold
    if the params are tracers.
    """
    try:
        mats = [(np.asarray(w, np.float64), np.asarray(b, np.float64)) for w, b in params]
    except Exception:  # tracers (e.g. wrapper under jit): stay in f32 on device
        mats = [(jnp.asarray(w, jnp.float32), jnp.asarray(b, jnp.float32)) for w, b in params]
    w, b = mats[0]
    for wi, bi in mats[1:]:
        b = b @ wi + bi
        w = w @ wi
    return w, b


def _select_tiling(total_rows, x_row_bytes, row_vmem_bytes, fixed_vmem_bytes, budget):
    """Pick (tile_rows, grid).

    Tile as big as the VMEM budget allows; keep >= _MIN_GRID_STEPS steps on
    large batches (so the "parallel" axis shards across v7x's two TCs), but
    never so many steps that the ~0.35us per-step overhead dominates the
    per-step HBM time.  Prefer tiles that divide total_rows exactly so the
    host-side pad copy of x is skipped.
    """
    avail = max(budget - fixed_vmem_bytes - (2 << 20), 2 << 20)
    max_rows = max((avail // row_vmem_bytes) // _SUBLANE * _SUBLANE, _SUBLANE)
    steps_cap = max(_SUBLANE, _round_up(_cdiv(total_rows, _MIN_GRID_STEPS), _SUBLANE))
    floor_rows = _round_up(_cdiv(_MIN_STEP_X_BYTES, max(x_row_bytes, 1)), _SUBLANE)
    tile_rows = int(min(max_rows, max(steps_cap, floor_rows)))
    if tile_rows >= total_rows:
        return total_rows, 1
    for t in range(tile_rows, max(_SUBLANE, tile_rows // 2) - 1, -_SUBLANE):
        if total_rows % t == 0:
            return t, total_rows // t
    return tile_rows, _cdiv(total_rows, tile_rows)


# ---------------------------------------------------------------------------
# Kernel A: fully collapsed forward (lane-packed GEMV per batch tile)
# ---------------------------------------------------------------------------
def _collapsed_kernel(x_ref, w_ref, b_ref, o_ref):
    # x_ref: (tile_rows, on*F) -- row r holds `on` consecutive batch rows.
    # w_ref: (on*F, on) block-diagonal kron(I_on, w_eff).
    # out[r, c] = sum_f x[r*on + c, f] * w_eff[f] + b_eff  (lane-dense in c).
    y = jnp.dot(x_ref[...], w_ref[...], preferred_element_type=jnp.float32)
    o_ref[...] = (y + b_ref[...]).astype(o_ref.dtype)


def mlp_forward(x, params, tile_rows=None, out_lanes=None):
    """Collapsed (inference) forward.

    x: [batch, input_size] float32; params: list of (W [in,out], b [1,out]).
    """
    batch, in_features = x.shape
    w_eff, b_eff = _fold_affine(params)                  # [F,1], [1,1]

    # `on` batch rows share one lane row.  on=32 makes loads/stores lane-dense
    # (stores drop ~32x vs a (tile,1) output) while the MXU K-dim blowup (on x)
    # is small enough to stay HBM-bound on v5e/v6e/v7x.  For wide features the
    # kron weight would get large and stores are no longer the bottleneck, so
    # fall back to on=1 (plain GEMV).
    if out_lanes is None:
        out_lanes = _OUT_LANES if in_features <= _PACK_MAX_FEATURES else 1
    on = max(1, int(out_lanes))

    if isinstance(w_eff, np.ndarray):
        w_kron = jnp.asarray(np.kron(np.eye(on, dtype=np.float64), w_eff), jnp.float32)
        b_row = jnp.full((1, on), float(b_eff[0, 0]), jnp.float32)
    else:  # tracer fallback
        w_kron = jnp.kron(jnp.eye(on, dtype=jnp.float32), w_eff).astype(jnp.float32)
        b_row = jnp.broadcast_to(b_eff.astype(jnp.float32).reshape(1, 1), (1, on))

    budget = _vmem_budget()
    total_rows = _cdiv(batch, on)
    x_row_bytes = on * in_features * 4                            # HBM bytes / packed row
    row_vmem_bytes = (_round_up(on * in_features, _LANE) * 4 * 2  # x tile (double-buffered)
                      + _LANE * 4 * 2)                            # out tile
    fixed = (_padded_tile_bytes(w_kron.shape, jnp.float32, 2)
             + _padded_tile_bytes((1, on), jnp.float32, 2))

    if tile_rows is None:
        tile_rows, grid = _select_tiling(total_rows, x_row_bytes, row_vmem_bytes,
                                         fixed, budget)
    else:
        tile_rows = max(_SUBLANE, _round_up(int(tile_rows), _SUBLANE))
        if tile_rows >= total_rows:
            tile_rows, grid = total_rows, 1
        else:
            grid = _cdiv(total_rows, tile_rows)

    rows_p = tile_rows * grid
    batch_p = rows_p * on
    if batch_p != batch:
        # NOTE: jnp.pad copies x; callers with large batches should pass a
        # batch that is a multiple of 32 (and ideally of 256) to skip this.
        x = jnp.pad(x, ((0, batch_p - batch), (0, 0)))
    x_rs = x.reshape(rows_p, on * in_features)   # contiguous -> free reinterpretation

    est = (_padded_tile_bytes((tile_rows, on * in_features), jnp.float32, 2)
           + _padded_tile_bytes((tile_rows, on), jnp.float32, 2)
           + fixed)

    out = pl.pallas_call(
        _collapsed_kernel,
        out_shape=jax.ShapeDtypeStruct((rows_p, on), jnp.float32),
        grid=(grid,),
        in_specs=[
            pl.BlockSpec((tile_rows, on * in_features), lambda i: (i, 0)),
            pl.BlockSpec(w_kron.shape, lambda i: (0, 0)),   # DMA'd once, VMEM-resident
            pl.BlockSpec((1, on), lambda i: (0, 0)),
        ],
        out_specs=pl.BlockSpec((tile_rows, on), lambda i: (i, 0)),
        compiler_params=pltpu.CompilerParams(
            dimension_semantics=("parallel",),              # 2-TC sharding on v7x
            vmem_limit_bytes=_vmem_limit(est, budget),
        ),
    )(x_rs, w_kron, b_row)
    return out.reshape(batch_p, 1)[:batch]


# ---------------------------------------------------------------------------
# Kernel B: layer-preserving fused forward (tail 128->64->16->1 pre-folded)
# ---------------------------------------------------------------------------
def _layers_kernel(x_ref, w1_ref, b1_ref, w2_ref, b2_ref, wt_ref, bt_ref, o_ref):
    # Linear(input_size, 1024)   [+ Dropout(0.2) -> identity at inference]
    h = jnp.dot(x_ref[...], w1_ref[...], preferred_element_type=jnp.float32) + b1_ref[...]
    # Linear(1024, 128)          [+ Dropout(0.2) -> identity at inference]
    h = jnp.dot(h, w2_ref[...], preferred_element_type=jnp.float32) + b2_ref[...]
    # Linear(128,64)+Dropout(0.1)+Linear(64,16)+Linear(16,1) folded to [128,1].
    y = jnp.dot(h, wt_ref[...], preferred_element_type=jnp.float32) + bt_ref[...]
    o_ref[...] = y.astype(o_ref.dtype)


def mlp_forward_layers(x, params, tile_b=None):
    """Layer-preserving path (for when nonlinearities are added later).

    Uses its own, smaller tile bound: the [tile_b, 1024] f32 intermediate
    dominates VMEM/vreg pressure, so the collapsed path's huge tiles are NOT
    reused here.
    """
    batch, in_features = x.shape
    (w1, b1), (w2, b2) = params[0], params[1]
    wt, bt = _fold_affine(params[2:])
    wt = jnp.asarray(wt, jnp.float32)
    bt = jnp.asarray(bt, jnp.float32)

    budget = _vmem_budget()
    if tile_b is None:
        tile_b = _LAYERS_MAX_TILE_B
    tile_b = max(_SUBLANE,
                 _round_up(min(int(tile_b), _round_up(batch, _SUBLANE)), _SUBLANE))
    batch_p = _round_up(batch, tile_b)
    if batch_p != batch:
        x = jnp.pad(x, ((0, batch_p - batch), (0, 0)))
    grid = batch_p // tile_b

    # NOTE: w1/w2/wt have constant index maps (resident); Pallas still
    # double-buffers them.  pl.Buffered(1) would reclaim ~0.6 MiB but is
    # skipped here in favour of guaranteed lowering.
    est = (_padded_tile_bytes((tile_b, in_features), jnp.float32, 2)
           + _padded_tile_bytes((tile_b, 1), jnp.float32, 2)
           + _padded_tile_bytes(w1.shape, w1.dtype, 2)
           + _padded_tile_bytes(b1.shape, b1.dtype, 2)
           + _padded_tile_bytes(w2.shape, w2.dtype, 2)
           + _padded_tile_bytes(b2.shape, b2.dtype, 2)
           + _padded_tile_bytes(wt.shape, wt.dtype, 2)
           + _padded_tile_bytes(bt.shape, bt.dtype, 2)
           + _padded_tile_bytes((tile_b, HIDDEN[0]), jnp.float32, 1)   # h1
           + _padded_tile_bytes((tile_b, HIDDEN[1]), jnp.float32, 1))  # h2

    out = pl.pallas_call(
        _layers_kernel,
        out_shape=jax.ShapeDtypeStruct((batch_p, 1), jnp.float32),
        grid=(grid,),
        in_specs=[
            pl.BlockSpec((tile_b, in_features), lambda i: (i, 0)),
            pl.BlockSpec(w1.shape, lambda i: (0, 0)),
            pl.BlockSpec(b1.shape, lambda i: (0, 0)),
            pl.BlockSpec(w2.shape, lambda i: (0, 0)),
            pl.BlockSpec(b2.shape, lambda i: (0, 0)),
            pl.BlockSpec(wt.shape, lambda i: (0, 0)),
            pl.BlockSpec(bt.shape, lambda i: (0, 0)),
        ],
        out_specs=pl.BlockSpec((tile_b, 1), lambda i: (i, 0)),
        compiler_params=pltpu.CompilerParams(
            dimension_semantics=("parallel",),
            vmem_limit_bytes=_vmem_limit(est, budget),
        ),
    )(x, w1, b1, w2, b2, wt, bt)
    return out[:batch]


# ---------------------------------------------------------------------------
# Parameter init and pure-JAX reference
# ---------------------------------------------------------------------------
def init_params(key, input_size):
    """Deterministic parameter init (PyTorch-Linear-style uniform bounds)."""
    dims = (input_size,) + HIDDEN
    params = []
    for i in range(len(HIDDEN)):
        fan_in, fan_out = dims[i], dims[i + 1]
        key, kw, kb = jax.random.split(key, 3)
        bound = 1.0 / math.sqrt(float(fan_in))
        w = jax.random.uniform(kw, (fan_in, fan_out), jnp.float32, -bound, bound)
        b = jax.random.uniform(kb, (1, fan_out), jnp.float32, -bound, bound)
        params.append((w, b))
    return params


def reference_forward(x, params):
    """Layer-by-layer pure-JAX reference (Dropout = identity at inference)."""
    h = x
    for w, b in params:
        h = h @ w + b
    return h


# ---------------------------------------------------------------------------
# main
# ---------------------------------------------------------------------------
if __name__ == "__main__":
    input_size = 32

    key = jax.random.PRNGKey(0)
    key, kx, kx2, kx3 = jax.random.split(key, 4)
    params = init_params(key, input_size)

    # Case 1: tiny batch (single grid step).
    x = jax.random.normal(kx, (8, input_size), jnp.float32)
    ref = reference_forward(x, params)

    out_fast = jax.block_until_ready(mlp_forward(x, params))
    assert out_fast.shape == (8, 1), out_fast.shape
    assert jnp.allclose(out_fast, ref, atol=1e-4, rtol=1e-4), "collapsed kernel mismatch"

    out_layers = jax.block_until_ready(mlp_forward_layers(x, params))
    assert out_layers.shape == (8, 1), out_layers.shape
    assert jnp.allclose(out_layers, ref, atol=1e-4, rtol=1e-4), "layered kernel mismatch"

    # Case 2: ragged batch (exercises batch padding / lane-group packing) and
    # the on=1 wide fallback branch.
    x2 = jax.random.normal(kx2, (133, input_size), jnp.float32)
    ref2 = reference_forward(x2, params)

    out_fast2 = jax.block_until_ready(mlp_forward(x2, params))
    assert out_fast2.shape == (133, 1), out_fast2.shape
    assert jnp.allclose(out_fast2, ref2, atol=1e-4, rtol=1e-4), "collapsed (packed) mismatch"

    out_wide2 = jax.block_until_ready(mlp_forward(x2, params, out_lanes=1))
    assert out_wide2.shape == (133, 1), out_wide2.shape
    assert jnp.allclose(out_wide2, ref2, atol=1e-4, rtol=1e-4), "collapsed (wide) mismatch"

    out_layers2 = jax.block_until_ready(mlp_forward_layers(x2, params, tile_b=64))
    assert out_layers2.shape == (133, 1), out_layers2.shape
    assert jnp.allclose(out_layers2, ref2, atol=1e-4, rtol=1e-4), "layered (tiled) mismatch"

    # Case 3: multi-step grid (exercises the "parallel" batch axis, resident
    # weights across steps, batch padding and row tiling).
    x3 = jax.random.normal(kx3, (2300, input_size), jnp.float32)
    ref3 = reference_forward(x3, params)

    out_fast3 = jax.block_until_ready(mlp_forward(x3, params, tile_rows=8))
    assert out_fast3.shape == (2300, 1), out_fast3.shape
    assert jnp.allclose(out_fast3, ref3, atol=1e-4, rtol=1e-4), "collapsed (multi-step) mismatch"

    out_fast3d = jax.block_until_ready(mlp_forward(x3, params))
    assert jnp.allclose(out_fast3d, ref3, atol=1e-4, rtol=1e-4), "collapsed (auto-tile) mismatch"

    print("KERNEL_OK")
</pallas_src>

<mosaic_0001>
module attributes {stable_mosaic.version = 11 : i64} {
  func.func @_collapsed_kernel(%arg0: i32, %arg1: memref<1x1024xf32, #tpu.memory_space<vmem>>, %arg2: memref<1024x32xf32, #tpu.memory_space<vmem>>, %arg3: memref<1x32xf32, #tpu.memory_space<vmem>>, %arg4: memref<1x32xf32, #tpu.memory_space<vmem>>) attributes {dimension_semantics = [#tpu.dimension_semantics<parallel>], iteration_bounds = array<i64: 1>, scalar_prefetch = 0 : i64, scratch_operands = 0 : i64, tpu.core_type = #tpu.core_type<tc>, window_params = [{transform_indices = @transform_0, window_bounds = array<i64: 1, 1024>}, {pipeline_mode = #tpu.pipeline_mode<synchronous>, transform_indices = @transform_1, window_bounds = array<i64: 1024, 32>}, {pipeline_mode = #tpu.pipeline_mode<synchronous>, transform_indices = @transform_2, window_bounds = array<i64: 1, 32>}, {transform_indices = @transform_3, window_bounds = array<i64: 1, 32>}]} {
    %c0 = arith.constant 0 : index
    %c0_0 = arith.constant 0 : index
    %0 = vector.load %arg1[%c0, %c0_0] : memref<1x1024xf32, #tpu.memory_space<vmem>>, vector<1x1024xf32>
    %c0_1 = arith.constant 0 : index
    %c0_2 = arith.constant 0 : index
    %1 = vector.load %arg2[%c0_1, %c0_2] : memref<1024x32xf32, #tpu.memory_space<vmem>>, vector<1024x32xf32>
    %cst = arith.constant dense<0.000000e+00> : vector<1x32xf32>
    %2 = tpu.matmul %0, %1, %cst {dimension_numbers = #tpu.dot_dimension_numbers<[1], [0], [0], [1], [0, 0, 1, 1], [], []>} : vector<1x1024xf32>, vector<1024x32xf32>, vector<1x32xf32> -> vector<1x32xf32>
    %c0_3 = arith.constant 0 : index
    %c0_4 = arith.constant 0 : index
    %3 = vector.load %arg3[%c0_3, %c0_4] : memref<1x32xf32, #tpu.memory_space<vmem>>, vector<1x32xf32>
    %4 = arith.addf %2, %3 : vector<1x32xf32>
    %c0_5 = arith.constant 0 : index
    %c0_6 = arith.constant 0 : index
    %5 = vector.load %arg4[%c0_5, %c0_6] : memref<1x32xf32, #tpu.memory_space<vmem>>, vector<1x32xf32>
    tpu.vector_store %arg4[%c0_5, %c0_6], %4 {strides = array<i32>} : memref<1x32xf32, #tpu.memory_space<vmem>>, vector<1x32xf32>,
    return
  }
  func.func @transform_0(%arg0: i32) -> (i32, i32) {
    %c0_i32 = arith.constant 0 : i32
    %c0_i32_0 = arith.constant 0 : i32
    return %arg0, %c0_i32 : i32, i32
  }
  func.func @transform_1(%arg0: i32) -> (i32, i32) {
    %c0_i32 = arith.constant 0 : i32
    %c0_i32_0 = arith.constant 0 : i32
    %c0_i32_1 = arith.constant 0 : i32
    return %c0_i32, %c0_i32_0 : i32, i32
  }
  func.func @transform_2(%arg0: i32) -> (i32, i32) {
    %c0_i32 = arith.constant 0 : i32
    %c0_i32_0 = arith.constant 0 : i32
    %c0_i32_1 = arith.constant 0 : i32
    return %c0_i32, %c0_i32_0 : i32, i32
  }
  func.func @transform_3(%arg0: i32) -> (i32, i32) {
    %c0_i32 = arith.constant 0 : i32
    %c0_i32_0 = arith.constant 0 : i32
    return %arg0, %c0_i32 : i32, i32
  }
}

</mosaic_0001>

<llo_original>
// kernel: tpu_custom_call.1
$region0: #{tpu_custom_call.1}
  #allocation0 [shape = 'u32[]', space=smem, size = 0x4, offset = 0x4, fixed_abs, tag = 'smem constant byte address 0x4 - core index']
  #allocation1 [shape = 'u32[72,128]{1,0:T(1,128)}', space=vmem, size = 0x9000, scoped, tag = 'internal scratch']
  %s0 = inlined_call_operand.vmem [shape: f32[1,1024], index: 0, kind: input, shape index: {}]
  %s1 = inlined_call_operand.vmem [shape: f32[1024,32], index: 1, kind: input, shape index: {}]
  %s2 = inlined_call_operand.vmem [shape: f32[1,32], index: 2, kind: input, shape index: {}]
  %s3 = inlined_call_operand.hbm [shape: f32[1,32], index: 3, kind: output, shape index: {}]
  %s4 = sld [smem:[#allocation0]]
  $region22: #{tpu_custom_call.1} parent=0
    _
  %s6 = ssub.s32 1, %s4
  %s7 = scalar_select 0, %s6, %s4
  $region1: #{tpu_custom_call.1} parent=0
    #allocation2 [shape = 'u8[512]{0}', space=vmem, size = 0x400, scoped, tag = 'output window, operand 0, single buffered']
    #allocation3 [shape = 's32[1]{0}', space=sflag, size = 0x4, scoped, tag = 'scoped memory for tpu_custom_call.1']
    %8 = vsyncpa [#allocation3], 0
    // Predicated region
    $region2: #{tpu_custom_call.1} parent=1 // pred_check
      _
    $region3: #{tpu_custom_call.1} parent=1 // pred_check_branch
      %10 = sbr.rel (0) target = $region5
    $region4: #{tpu_custom_call.1} parent=1 // pred_region
      _
    $region5: #{tpu_custom_call.1} parent=1 // pred_fallthru
      _
    // Predicated region
    $region6: #{tpu_custom_call.1} parent=1 // pred_check
      _
    $region7: #{tpu_custom_call.1} parent=1 // pred_check_branch
      %12 = sbr.rel (0) target = $region9
    $region8: #{tpu_custom_call.1} parent=1 // pred_region
      _
    $region9: #{tpu_custom_call.1} parent=1 // pred_fallthru
      _
    // Predicated region
    $region10: #{tpu_custom_call.1} parent=1 // pred_check
      _
    $region11: #{tpu_custom_call.1} parent=1 // pred_check_branch
      %14 = sbr.rel (0) target = $region13
    $region12: #{tpu_custom_call.1} parent=1 // pred_region
      _
    $region13: #{tpu_custom_call.1} parent=1 // pred_fallthru
      _
    %v15 = vld [vmem:[%s0] sm:$0xff]
    %v16 = vld [vmem:[%s1] sm:$0xff]
    %v17 = vld [vmem:[%s1 + $0x8] sm:$0xff]
    %v18 = vld [vmem:[%s1 + $0x10] sm:$0xff]
    %v19 = vld [vmem:[%s1 + $0x18] sm:$0xff]
    %v20 = vld [vmem:[%s1 + $0x20] sm:$0xff]
    %v21 = vld [vmem:[%s1 + $0x28] sm:$0xff]
    %v22 = vld [vmem:[%s1 + $0x30] sm:$0xff]
    %v23 = vld [vmem:[%s1 + $0x38] sm:$0xff]
    %v24 = vld [vmem:[%s1 + $0x40] sm:$0xff]
    %v25 = vld [vmem:[%s1 + $0x48] sm:$0xff]
    %v26 = vld [vmem:[%s1 + $0x50] sm:$0xff]
    %v27 = vld [vmem:[%s1 + $0x58] sm:$0xff]
    %v28 = vld [vmem:[%s1 + $0x60] sm:$0xff]
    %v29 = vld [vmem:[%s1 + $0x68] sm:$0xff]
    %v30 = vld [vmem:[%s1 + $0x70] sm:$0xff]
    %v31 = vld [vmem:[%s1 + $0x78] sm:$0xff]
    %v32 = vld [vmem:[%s1 + $0x80] sm:$0xff]
    %v33 = vld [vmem:[%s1 + $0x88] sm:$0xff]
    %v34 = vld [vmem:[%s1 + $0x90] sm:$0xff]
    %v35 = vld [vmem:[%s1 + $0x98] sm:$0xff]
    %v36 = vld [vmem:[%s1 + $0xa0] sm:$0xff]
    %v37 = vld [vmem:[%s1 + $0xa8] sm:$0xff]
    %v38 = vld [vmem:[%s1 + $0xb0] sm:$0xff]
    %v39 = vld [vmem:[%s1 + $0xb8] sm:$0xff]
    %v40 = vld [vmem:[%s1 + $0xc0] sm:$0xff]
    %v41 = vld [vmem:[%s1 + $0xc8] sm:$0xff]
    %v42 = vld [vmem:[%s1 + $0xd0] sm:$0xff]
    %v43 = vld [vmem:[%s1 + $0xd8] sm:$0xff]
    %v44 = vld [vmem:[%s1 + $0xe0] sm:$0xff]
    %v45 = vld [vmem:[%s1 + $0xe8] sm:$0xff]
    %v46 = vld [vmem:[%s1 + $0xf0] sm:$0xff]
    %v47 = vld [vmem:[%s1 + $0xf8] sm:$0xff]
    %v48 = vld [vmem:[%s1 + $0x100] sm:$0xff]
    %v49 = vld [vmem:[%s1 + $0x108] sm:$0xff]
    %v50 = vld [vmem:[%s1 + $0x110] sm:$0xff]
    %v51 = vld [vmem:[%s1 + $0x118] sm:$0xff]
    %v52 = vld [vmem:[%s1 + $0x120] sm:$0xff]
    %v53 = vld [vmem:[%s1 + $0x128] sm:$0xff]
    %v54 = vld [vmem:[%s1 + $0x130] sm:$0xff]
    %v55 = vld [vmem:[%s1 + $0x138] sm:$0xff]
    %v56 = vld [vmem:[%s1 + $0x140] sm:$0xff]
    %v57 = vld [vmem:[%s1 + $0x148] sm:$0xff]
    %v58 = vld [vmem:[%s1 + $0x150] sm:$0xff]
    %v59 = vld [vmem:[%s1 + $0x158] sm:$0xff]
    %v60 = vld [vmem:[%s1 + $0x160] sm:$0xff]
    %v61 = vld [vmem:[%s1 + $0x168] sm:$0xff]
    %v62 = vld [vmem:[%s1 + $0x170] sm:$0xff]
    %v63 = vld [vmem:[%s1 + $0x178] sm:$0xff]
    %v64 = vld [vmem:[%s1 + $0x180] sm:$0xff]
    %v65 = vld [vmem:[%s1 + $0x188] sm:$0xff]
    %v66 = vld [vmem:[%s1 + $0x190] sm:$0xff]
    %v67 = vld [vmem:[%s1 + $0x198] sm:$0xff]
    %v68 = vld [vmem:[%s1 + $0x1a0] sm:$0xff]
    %v69 = vld [vmem:[%s1 + $0x1a8] sm:$0xff]
    %v70 = vld [vmem:[%s1 + $0x1b0] sm:$0xff]
    %v71 = vld [vmem:[%s1 + $0x1b8] sm:$0xff]
    %v72 = vld [vmem:[%s1 + $0x1c0] sm:$0xff]
    %v73 = vld [vmem:[%s1 + $0x1c8] sm:$0xff]
    %v74 = vld [vmem:[%s1 + $0x1d0] sm:$0xff]
    %v75 = vld [vmem:[%s1 + $0x1d8] sm:$0xff]
    %v76 = vld [vmem:[%s1 + $0x1e0] sm:$0xff]
    %v77 = vld [vmem:[%s1 + $0x1e8] sm:$0xff]
    %v78 = vld [vmem:[%s1 + $0x1f0] sm:$0xff]
    %v79 = vld [vmem:[%s1 + $0x1f8] sm:$0xff]
    %v80 = vld [vmem:[%s1 + $0x200] sm:$0xff]
    %v81 = vld [vmem:[%s1 + $0x208] sm:$0xff]
    %v82 = vld [vmem:[%s1 + $0x210] sm:$0xff]
    %v83 = vld [vmem:[%s1 + $0x218] sm:$0xff]
    %v84 = vld [vmem:[%s1 + $0x220] sm:$0xff]
    %v85 = vld [vmem:[%s1 + $0x228] sm:$0xff]
    %v86 = vld [vmem:[%s1 + $0x230] sm:$0xff]
    %v87 = vld [vmem:[%s1 + $0x238] sm:$0xff]
    %v88 = vld [vmem:[%s1 + $0x240] sm:$0xff]
    %v89 = vld [vmem:[%s1 + $0x248] sm:$0xff]
    %v90 = vld [vmem:[%s1 + $0x250] sm:$0xff]
    %v91 = vld [vmem:[%s1 + $0x258] sm:$0xff]
    %v92 = vld [vmem:[%s1 + $0x260] sm:$0xff]
    %v93 = vld [vmem:[%s1 + $0x268] sm:$0xff]
    %v94 = vld [vmem:[%s1 + $0x270] sm:$0xff]
    %v95 = vld [vmem:[%s1 + $0x278] sm:$0xff]
    %v96 = vld [vmem:[%s1 + $0x280] sm:$0xff]
    %v97 = vld [vmem:[%s1 + $0x288] sm:$0xff]
    %v98 = vld [vmem:[%s1 + $0x290] sm:$0xff]
    %v99 = vld [vmem:[%s1 + $0x298] sm:$0xff]
    %v100 = vld [vmem:[%s1 + $0x2a0] sm:$0xff]
    %v101 = vld [vmem:[%s1 + $0x2a8] sm:$0xff]
    %v102 = vld [vmem:[%s1 + $0x2b0] sm:$0xff]
    %v103 = vld [vmem:[%s1 + $0x2b8] sm:$0xff]
    %v104 = vld [vmem:[%s1 + $0x2c0] sm:$0xff]
    %v105 = vld [vmem:[%s1 + $0x2c8] sm:$0xff]
    %v106 = vld [vmem:[%s1 + $0x2d0] sm:$0xff]
    %v107 = vld [vmem:[%s1 + $0x2d8] sm:$0xff]
    %v108 = vld [vmem:[%s1 + $0x2e0] sm:$0xff]
    %v109 = vld [vmem:[%s1 + $0x2e8] sm:$0xff]
    %v110 = vld [vmem:[%s1 + $0x2f0] sm:$0xff]
    %v111 = vld [vmem:[%s1 + $0x2f8] sm:$0xff]
    %v112 = vld [vmem:[%s1 + $0x300] sm:$0xff]
    %v113 = vld [vmem:[%s1 + $0x308] sm:$0xff]
    %v114 = vld [vmem:[%s1 + $0x310] sm:$0xff]
    %v115 = vld [vmem:[%s1 + $0x318] sm:$0xff]
    %v116 = vld [vmem:[%s1 + $0x320] sm:$0xff]
    %v117 = vld [vmem:[%s1 + $0x328] sm:$0xff]
    %v118 = vld [vmem:[%s1 + $0x330] sm:$0xff]
    %v119 = vld [vmem:[%s1 + $0x338] sm:$0xff]
    %v120 = vld [vmem:[%s1 + $0x340] sm:$0xff]
    %v121 = vld [vmem:[%s1 + $0x348] sm:$0xff]
    %v122 = vld [vmem:[%s1 + $0x350] sm:$0xff]
    %v123 = vld [vmem:[%s1 + $0x358] sm:$0xff]
    %v124 = vld [vmem:[%s1 + $0x360] sm:$0xff]
    %v125 = vld [vmem:[%s1 + $0x368] sm:$0xff]
    %v126 = vld [vmem:[%s1 + $0x370] sm:$0xff]
    %v127 = vld [vmem:[%s1 + $0x378] sm:$0xff]
    %v128 = vld [vmem:[%s1 + $0x380] sm:$0xff]
    %v129 = vld [vmem:[%s1 + $0x388] sm:$0xff]
    %v130 = vld [vmem:[%s1 + $0x390] sm:$0xff]
    %v131 = vld [vmem:[%s1 + $0x398] sm:$0xff]
    %v132 = vld [vmem:[%s1 + $0x3a0] sm:$0xff]
    %v133 = vld [vmem:[%s1 + $0x3a8] sm:$0xff]
    %v134 = vld [vmem:[%s1 + $0x3b0] sm:$0xff]
    %v135 = vld [vmem:[%s1 + $0x3b8] sm:$0xff]
    %v136 = vld [vmem:[%s1 + $0x3c0] sm:$0xff]
    %v137 = vld [vmem:[%s1 + $0x3c8] sm:$0xff]
    %v138 = vld [vmem:[%s1 + $0x3d0] sm:$0xff]
    %v139 = vld [vmem:[%s1 + $0x3d8] sm:$0xff]
    %v140 = vld [vmem:[%s1 + $0x3e0] sm:$0xff]
    %v141 = vld [vmem:[%s1 + $0x3e8] sm:$0xff]
    %v142 = vld [vmem:[%s1 + $0x3f0] sm:$0xff]
    %v143 = vld [vmem:[%s1 + $0x3f8] sm:$0xff]
    %v144 = vld [vmem:[%s2] sm:$0x1]
    %v146 = vperm.slane %v15, 0
    %v147 = vperm.slane %v15, 1
    %v148 = vperm.slane %v15, 2
    %v149 = vperm.slane %v15, 3
    %v150 = vperm.slane %v15, 4
    %v151 = vperm.slane %v15, 5
    %v152 = vperm.slane %v15, 6
    %v153 = vperm.slane %v15, 7
    %162 = vmatpush.msra.mxu0 %v31
    %163 = vmatpush.msra.mxu0 %v30
    %164 = vmatpush.msra.mxu0 %v29
    %165 = vmatpush.msra.mxu0 %v28
    %166 = vmatpush.msra.mxu0 %v27
    %167 = vmatpush.msra.mxu0 %v26
    %168 = vmatpush.msra.mxu0 %v25
    %169 = vmatpush.msra.mxu0 %v24
    %170 = vmatpush.msra.mxu0 %v23
    %171 = vmatpush.msra.mxu0 %v22
    %172 = vmatpush.msra.mxu0 %v21
    %173 = vmatpush.msra.mxu0 %v20
    %174 = vmatpush.msra.mxu0 %v19
    %175 = vmatpush.msra.mxu0 %v18
    %176 = vmatpush.msra.mxu0 %v17
    %177 = vmatpush.msra.mxu0 %v16
    %178 = vmatmul.f32.gmra.mxu0 %v146
    %v179 = vpop.f32.mrf.mxu0
    %v180 = vadd.f32 %v144, %v179
    %181 = vdwg.mxu0
    %182 = vmatpush.msra.mxu0 %v47
    %183 = vmatpush.msra.mxu0 %v46
    %184 = vmatpush.msra.mxu0 %v45
    %185 = vmatpush.msra.mxu0 %v44
    %186 = vmatpush.msra.mxu0 %v43
    %187 = vmatpush.msra.mxu0 %v42
    %188 = vmatpush.msra.mxu0 %v41
    %189 = vmatpush.msra.mxu0 %v40
    %190 = vmatpush.msra.mxu0 %v39
    %191 = vmatpush.msra.mxu0 %v38
    %192 = vmatpush.msra.mxu0 %v37
    %193 = vmatpush.msra.mxu0 %v36
    %194 = vmatpush.msra.mxu0 %v35
    %195 = vmatpush.msra.mxu0 %v34
    %196 = vmatpush.msra.mxu0 %v33
    %197 = vmatpush.msra.mxu0 %v32
    %198 = vmatmul.f32.gmra.mxu0 %v147
    %v199 = vpop.f32.mrf.mxu0
    %v200 = vadd.f32 %v180, %v199
    %201 = vdwg.mxu0
    %202 = vmatpush.msra.mxu0 %v63
    %203 = vmatpush.msra.mxu0 %v62
    %204 = vmatpush.msra.mxu0 %v61
    %205 = vmatpush.msra.mxu0 %v60
    %206 = vmatpush.msra.mxu0 %v59
    %207 = vmatpush.msra.mxu0 %v58
    %208 = vmatpush.msra.mxu0 %v57
    %209 = vmatpush.msra.mxu0 %v56
    %210 = vmatpush.msra.mxu0 %v55
    %211 = vmatpush.msra.mxu0 %v54
    %212 = vmatpush.msra.mxu0 %v53
    %213 = vmatpush.msra.mxu0 %v52
    %214 = vmatpush.msra.mxu0 %v51
    %215 = vmatpush.msra.mxu0 %v50
    %216 = vmatpush.msra.mxu0 %v49
    %217 = vmatpush.msra.mxu0 %v48
    %218 = vmatmul.f32.gmra.mxu0 %v148
    %v219 = vpop.f32.mrf.mxu0
    %v220 = vadd.f32 %v200, %v219
    %221 = vdwg.mxu0
    %222 = vmatpush.msra.mxu0 %v79
    %223 = vmatpush.msra.mxu0 %v78
    %224 = vmatpush.msra.mxu0 %v77
    %225 = vmatpush.msra.mxu0 %v76
    %226 = vmatpush.msra.mxu0 %v75
    %227 = vmatpush.msra.mxu0 %v74
    %228 = vmatpush.msra.mxu0 %v73
    %229 = vmatpush.msra.mxu0 %v72
    %230 = vmatpush.msra.mxu0 %v71
    %231 = vmatpush.msra.mxu0 %v70
    %232 = vmatpush.msra.mxu0 %v69
    %233 = vmatpush.msra.mxu0 %v68
    %234 = vmatpush.msra.mxu0 %v67
    %235 = vmatpush.msra.mxu0 %v66
    %236 = vmatpush.msra.mxu0 %v65
    %237 = vmatpush.msra.mxu0 %v64
    %238 = vmatmul.f32.gmra.mxu0 %v149
    %v239 = vpop.f32.mrf.mxu0
    %v240 = vadd.f32 %v220, %v239
    %241 = vdwg.mxu0
    %242 = vmatpush.msra.mxu0 %v95
    %243 = vmatpush.msra.mxu0 %v94
    %244 = vmatpush.msra.mxu0 %v93
    %245 = vmatpush.msra.mxu0 %v92
    %246 = vmatpush.msra.mxu0 %v91
    %247 = vmatpush.msra.mxu0 %v90
    %248 = vmatpush.msra.mxu0 %v89
    %249 = vmatpush.msra.mxu0 %v88
    %250 = vmatpush.msra.mxu0 %v87
    %251 = vmatpush.msra.mxu0 %v86
    %252 = vmatpush.msra.mxu0 %v85
    %253 = vmatpush.msra.mxu0 %v84
    %254 = vmatpush.msra.mxu0 %v83
    %255 = vmatpush.msra.mxu0 %v82
    %256 = vmatpush.msra.mxu0 %v81
    %257 = vmatpush.msra.mxu0 %v80
    %258 = vmatmul.f32.gmra.mxu0 %v150
    %v259 = vpop.f32.mrf.mxu0
    %v260 = vadd.f32 %v240, %v259
    %261 = vdwg.mxu0
    %262 = vmatpush.msra.mxu0 %v111
    %263 = vmatpush.msra.mxu0 %v110
    %264 = vmatpush.msra.mxu0 %v109
    %265 = vmatpush.msra.mxu0 %v108
    %266 = vmatpush.msra.mxu0 %v107
    %267 = vmatpush.msra.mxu0 %v106
    %268 = vmatpush.msra.mxu0 %v105
    %269 = vmatpush.msra.mxu0 %v104
    %270 = vmatpush.msra.mxu0 %v103
    %271 = vmatpush.msra.mxu0 %v102
    %272 = vmatpush.msra.mxu0 %v101
    %273 = vmatpush.msra.mxu0 %v100
    %274 = vmatpush.msra.mxu0 %v99
    %275 = vmatpush.msra.mxu0 %v98
    %276 = vmatpush.msra.mxu0 %v97
    %277 = vmatpush.msra.mxu0 %v96
    %278 = vmatmul.f32.gmra.mxu0 %v151
    %v279 = vpop.f32.mrf.mxu0
    %v280 = vadd.f32 %v260, %v279
    %281 = vdwg.mxu0
    %282 = vmatpush.msra.mxu0 %v127
    %283 = vmatpush.msra.mxu0 %v126
    %284 = vmatpush.msra.mxu0 %v125
    %285 = vmatpush.msra.mxu0 %v124
    %286 = vmatpush.msra.mxu0 %v123
    %287 = vmatpush.msra.mxu0 %v122
    %288 = vmatpush.msra.mxu0 %v121
    %289 = vmatpush.msra.mxu0 %v120
    %290 = vmatpush.msra.mxu0 %v119
    %291 = vmatpush.msra.mxu0 %v118
    %292 = vmatpush.msra.mxu0 %v117
    %293 = vmatpush.msra.mxu0 %v116
    %294 = vmatpush.msra.mxu0 %v115
    %295 = vmatpush.msra.mxu0 %v114
    %296 = vmatpush.msra.mxu0 %v113
    %297 = vmatpush.msra.mxu0 %v112
    %298 = vmatmul.f32.gmra.mxu0 %v152
    %v299 = vpop.f32.mrf.mxu0
    %v300 = vadd.f32 %v280, %v299
    %301 = vdwg.mxu0
    %302 = vmatpush.msra.mxu0 %v143
    %303 = vmatpush.msra.mxu0 %v142
    %304 = vmatpush.msra.mxu0 %v141
    %305 = vmatpush.msra.mxu0 %v140
    %306 = vmatpush.msra.mxu0 %v139
    %307 = vmatpush.msra.mxu0 %v138
    %308 = vmatpush.msra.mxu0 %v137
    %309 = vmatpush.msra.mxu0 %v136
    %310 = vmatpush.msra.mxu0 %v135
    %311 = vmatpush.msra.mxu0 %v134
    %312 = vmatpush.msra.mxu0 %v133
    %313 = vmatpush.msra.mxu0 %v132
    %314 = vmatpush.msra.mxu0 %v131
    %315 = vmatpush.msra.mxu0 %v130
    %316 = vmatpush.msra.mxu0 %v129
    %317 = vmatpush.msra.mxu0 %v128
    %318 = vmatmul.f32.gmra.mxu0 %v153
    %v319 = vpop.f32.mrf.mxu0
    %v320 = vadd.f32 %v300, %v319
    %321 = vdwg.mxu0
    %vm322 = vcmask 253952
    %323 = vst.msk [vmem:[#allocation2] sm:$0x1] %vm322, %v320
    // Predicated region
    $region14: #{tpu_custom_call.1} parent=1 // pred_check
      _
    $region15: #{tpu_custom_call.1} parent=1 // pred_check_branch
      %325 = sbr.rel (0) target = $region17
    $region16: #{tpu_custom_call.1} parent=1 // pred_region
      %327 = vsyncadd [#allocation3], 0
      %s329 = sshll.u32 [#allocation2], 4
      %s330 = int_to_ptr.vmem [resolvable:$true] %s329
      %s331 = sshll.u32 %s3, 4
      %s332 = int_to_ptr.hbm [resolvable:$true] %s331
      %334 = dma.vmem_to_hbm [thread:$0]  %s330, 16, %s332, [#allocation3]
    $region17: #{tpu_custom_call.1} parent=1 // pred_fallthru
      _
    // Predicated region
    $region18: #{tpu_custom_call.1} parent=1 // pred_check
      _
    $region19: #{tpu_custom_call.1} parent=1 // pred_check_branch
      %336 = sbr.rel (0) target = $region21
    $region20: #{tpu_custom_call.1} parent=1 // pred_region
      %338 = dma.done [#allocation3], 16
    $region21: #{tpu_custom_call.1} parent=1 // pred_fallthru
      _
    %339 = vsyncpa [#allocation3], 1

</llo_original>
